<compile_context>
chip_gen: v5e
topology: v5e:2x2
jax: 0.10.0
libtpu: 0.0.40
codegen_flags: <defaults>
</compile_context>

<pallas_src>
import math

import jax
import jax.numpy as jnp
from jax.experimental import pallas as pl
from jax.experimental.pallas import tpu as pltpu

HID_DIM = 32
N_HEADS = 4
HEAD_DIM = HID_DIM // N_HEADS
PF_DIM = 64
LN_EPS = 1e-5          # PyTorch nn.LayerNorm default
NEG_INF = -1e10

TARGET_ROWS = 1024                         # aim for ~1k rows (matmul M dim) per grid step
VMEM_TRANSIENT_BUDGET = 24 * 1024 * 1024   # per-step transient budget (sized for v7x 64 MiB)
VMEM_LIMIT_BYTES = 48 * 1024 * 1024        # explicit scoped-VMEM request


def _layer_norm(z, gamma, beta):
    mu = jnp.mean(z, axis=-1, keepdims=True)
    var = jnp.mean((z - mu) ** 2, axis=-1, keepdims=True)
    return (z - mu) * jax.lax.rsqrt(var + LN_EPS) * gamma + beta


def encoder_layer_kernel(mask_ref, x_ref,
                         wqkv_ref, wo_ref, w1_ref, w2_ref, vec_ref,
                         o_ref):
    R, D = x_ref.shape          # R = Bt * L rows
    Bt = mask_ref.shape[0]
    L = mask_ref.shape[2]

    x16 = x_ref[...]                         # bf16 (R, D)
    x32 = x16.astype(jnp.float32)            # f32 copy for residual / LN math

    vec = vec_ref[...]                       # (8, 128) packed f32 vectors
    bqkv = vec[0:1, :3 * D]
    bo = vec[1:2, :D]
    gamma = vec[2:3, :D]
    beta = vec[3:4, :D]
    b1 = vec[4:5, :PF_DIM]
    b2 = vec[5:6, :D]

    # ---- fused QKV projection: one MXU pass with N = 3*D (1/sqrt(dh) pre-folded into q) ----
    qkv = jnp.dot(x16, wqkv_ref[...], preferred_element_type=jnp.float32) + bqkv
    qkv3 = qkv.reshape(Bt, L, 3 * D).astype(jnp.bfloat16)    # L % 8 == 0 keeps tiles aligned

    # ---- additive mask bias, computed once and replicated per head (head-major leading axis) ----
    m = mask_ref[...].astype(jnp.float32)                    # (Bt, 1, L)
    neg_bias = jnp.where(m == 0.0, jnp.float32(NEG_INF), jnp.float32(0.0))
    neg_bias = jnp.concatenate([neg_bias] * N_HEADS, axis=0)  # (H*Bt, 1, L)

    # ---- multi-head self-attention, all heads batched on the leading axis ----
    # Head slices are lane slices; stacking them on axis 0 is a leading-dim copy (no 4D
    # transpose), giving ONE batched energy/ctx einsum and ONE softmax for all heads.
    qh = jnp.concatenate(
        [qkv3[..., 0 * D + h * HEAD_DIM: 0 * D + (h + 1) * HEAD_DIM] for h in range(N_HEADS)],
        axis=0)                                               # (H*Bt, L, dh)
    kh = jnp.concatenate(
        [qkv3[..., 1 * D + h * HEAD_DIM: 1 * D + (h + 1) * HEAD_DIM] for h in range(N_HEADS)],
        axis=0)
    vh = jnp.concatenate(
        [qkv3[..., 2 * D + h * HEAD_DIM: 2 * D + (h + 1) * HEAD_DIM] for h in range(N_HEADS)],
        axis=0)

    energy = jnp.einsum('bqd,bkd->bqk', qh, kh,
                        preferred_element_type=jnp.float32) + neg_bias      # (H*Bt, L, L)
    energy = energy - jnp.max(energy, axis=-1, keepdims=True)
    p = jnp.exp(energy)
    attn = p * pl.reciprocal(jnp.sum(p, axis=-1, keepdims=True), approx=True)
    # TODO(synk): dropout on attention weights omitted (eval-mode identity)
    ctx = jnp.einsum('bqk,bkd->bqd', attn.astype(jnp.bfloat16), vh,
                     preferred_element_type=jnp.float32)                    # (H*Bt, L, dh)

    # re-join heads along lanes -> a single K=D output-projection matmul
    ctx_cat = jnp.concatenate([ctx[h * Bt:(h + 1) * Bt] for h in range(N_HEADS)],
                              axis=-1)                                       # (Bt, L, D)
    attn_out = jnp.dot(ctx_cat.reshape(R, D).astype(jnp.bfloat16), wo_ref[...],
                       preferred_element_type=jnp.float32) + bo

    # ---- residual + shared LayerNorm (same LN params used twice, as in the module) ----
    src1 = _layer_norm(x32 + attn_out, gamma, beta)

    # ---- position-wise feed-forward ----
    h1 = jnp.dot(src1.astype(jnp.bfloat16), w1_ref[...],
                 preferred_element_type=jnp.float32) + b1
    h1 = jnp.maximum(h1, 0.0)
    ff = jnp.dot(h1.astype(jnp.bfloat16), w2_ref[...],
                 preferred_element_type=jnp.float32) + b2

    o_ref[...] = _layer_norm(src1 + ff, gamma, beta).astype(o_ref.dtype)


def _choose_block_b(B, L):
    """Pick sequences-per-grid-step: as fat as possible under the VMEM transient budget."""
    per_seq_bytes = (3 * N_HEADS * L * L      # energy / exp / attn transients (f32, all heads)
                     + 3 * HID_DIM * L        # fused qkv (f32)
                     + 8 * HID_DIM * L) * 4   # x32 / src1 / h1 / ff working copies (f32)
    bt_vmem = max(1, VMEM_TRANSIENT_BUDGET // per_seq_bytes)
    bt_rows = max(1, TARGET_ROWS // L)
    Bt = max(1, min(B, bt_vmem, bt_rows))
    # v7x has 2 TensorCores: keep >= 2 grid blocks when each half still has >= 256 rows.
    if Bt == B and B >= 2 and (B // 2) * L >= 256:
        Bt = pl.cdiv(B, 2)
    return Bt


def encoder_layer(src, src_mask, params, *, block_b=None):
    """src: [B, L, D] float, src_mask: [B, 1, 1, L] (1 keep / 0 mask). Returns f32 [B, L, D]."""
    B, L, D = src.shape
    assert D == HID_DIM
    assert L % 8 == 0, "seq length must be a multiple of 8 (sublane tile)"
    (wq, bq, wk, bk, wv, bv, wo, bo, gamma, beta, w1, b1, w2, b2) = params

    # ---- host-side parameter packing (free layout plumbing) ----
    scale = 1.0 / math.sqrt(HEAD_DIM)                                   # fold 1/sqrt(dh) into q
    wqkv = jnp.concatenate([wq * scale, wk, wv], axis=1).astype(jnp.bfloat16)   # (D, 3D)
    wo16 = wo.astype(jnp.bfloat16)
    w116 = w1.astype(jnp.bfloat16)
    w216 = w2.astype(jnp.bfloat16)
    # all small per-channel vectors packed into ONE (8,128) f32 tile: 1 DMA instead of 10
    vec = jnp.zeros((8, 128), jnp.float32)
    vec = vec.at[0, :3 * D].set(jnp.concatenate([bq[0] * scale, bk[0], bv[0]], axis=0))
    vec = vec.at[1, :D].set(bo[0])
    vec = vec.at[2, :D].set(gamma[0])
    vec = vec.at[3, :D].set(beta[0])
    vec = vec.at[4, :PF_DIM].set(b1[0])
    vec = vec.at[5, :D].set(b2[0])

    # ---- batch blocking: many sequences per grid step ----
    Bt = _choose_block_b(B, L) if block_b is None else max(1, min(B, int(block_b)))
    if (Bt * L) % 16 != 0:      # bf16 I/O: keep the row block a multiple of 16 sublanes
        Bt += 1
    n_blk = pl.cdiv(B, Bt)
    Bp = n_blk * Bt
    if Bp != B:   # pad batch; padded rows get an all-ones mask (numerically safe) and are dropped
        src = jnp.concatenate([src, jnp.zeros((Bp - B, L, D), src.dtype)], axis=0)
        src_mask = jnp.concatenate(
            [src_mask, jnp.ones((Bp - B,) + src_mask.shape[1:], src_mask.dtype)], axis=0)

    x2 = src.astype(jnp.bfloat16).reshape(Bp * L, D)      # bf16 activations: half the DMA bytes
    mask3 = src_mask.reshape(Bp, 1, L).astype(jnp.float32)
    R = Bt * L                                            # rows (matmul M dim) per grid step

    flops = (2 * Bp * L * D * (3 * D)                     # fused QKV projection
             + 2 * Bp * N_HEADS * L * L * HEAD_DIM * 2    # energy + context
             + 2 * Bp * L * D * D                         # output projection
             + 2 * Bp * L * D * PF_DIM * 2)               # FFN
    bytes_accessed = (x2.size * 2 + mask3.size * 4 + Bp * L * D * 2
                      + (wqkv.size + wo16.size + w116.size + w216.size) * 2 + vec.size * 4)

    out = pl.pallas_call(
        encoder_layer_kernel,
        out_shape=jax.ShapeDtypeStruct((Bp * L, D), jnp.bfloat16),   # bf16 writeback
        grid_spec=pltpu.PrefetchScalarGridSpec(
            num_scalar_prefetch=0,
            grid=(n_blk,),
            in_specs=[
                pl.BlockSpec((Bt, 1, L), lambda g: (g, 0, 0)),    # mask
                pl.BlockSpec((R, D), lambda g: (g, 0)),           # activations (bf16)
                pl.BlockSpec(wqkv.shape, lambda g: (0, 0)),       # grid-invariant resident weights
                pl.BlockSpec(wo16.shape, lambda g: (0, 0)),
                pl.BlockSpec(w116.shape, lambda g: (0, 0)),
                pl.BlockSpec(w216.shape, lambda g: (0, 0)),
                pl.BlockSpec((8, 128), lambda g: (0, 0)),         # packed bias / LN vectors
            ],
            out_specs=pl.BlockSpec((R, D), lambda g: (g, 0)),
        ),
        compiler_params=pltpu.CompilerParams(
            dimension_semantics=("parallel",),
            vmem_limit_bytes=VMEM_LIMIT_BYTES),
        cost_estimate=pl.CostEstimate(
            flops=flops,
            transcendentals=Bp * N_HEADS * L * L,
            bytes_accessed=bytes_accessed),
    )(mask3, x2, wqkv, wo16, w116, w216, vec)

    return out.reshape(Bp, L, D)[:B].astype(jnp.float32)


def init_params(key):
    """Deterministic synthetic parameters (weights stored as [in, out] = Linear.weight.T)."""
    ks = jax.random.split(key, 14)
    s = 0.05
    wq = jax.random.normal(ks[0], (HID_DIM, HID_DIM), jnp.float32) * s
    bq = jax.random.normal(ks[1], (1, HID_DIM), jnp.float32) * s
    wk = jax.random.normal(ks[2], (HID_DIM, HID_DIM), jnp.float32) * s
    bk = jax.random.normal(ks[3], (1, HID_DIM), jnp.float32) * s
    wv = jax.random.normal(ks[4], (HID_DIM, HID_DIM), jnp.float32) * s
    bv = jax.random.normal(ks[5], (1, HID_DIM), jnp.float32) * s
    wo = jax.random.normal(ks[6], (HID_DIM, HID_DIM), jnp.float32) * s
    bo = jax.random.normal(ks[7], (1, HID_DIM), jnp.float32) * s
    gamma = jnp.ones((1, HID_DIM), jnp.float32)
    beta = jnp.zeros((1, HID_DIM), jnp.float32)
    w1 = jax.random.normal(ks[8], (HID_DIM, PF_DIM), jnp.float32) * s
    b1 = jax.random.normal(ks[9], (1, PF_DIM), jnp.float32) * s
    w2 = jax.random.normal(ks[10], (PF_DIM, HID_DIM), jnp.float32) * s
    b2 = jax.random.normal(ks[11], (1, HID_DIM), jnp.float32) * s
    return (wq, bq, wk, bk, wv, bv, wo, bo, gamma, beta, w1, b1, w2, b2)


def reference(src, src_mask, params):
    """Pure-JAX f32 reference mirroring the PyTorch forward (eval mode)."""
    (wq, bq, wk, bk, wv, bv, wo, bo, gamma, beta, w1, b1, w2, b2) = params
    B, L, D = src.shape

    def ln(z):
        mu = jnp.mean(z, axis=-1, keepdims=True)
        var = jnp.mean((z - mu) ** 2, axis=-1, keepdims=True)
        return (z - mu) / jnp.sqrt(var + LN_EPS) * gamma + beta

    q = (src @ wq + bq).reshape(B, L, N_HEADS, HEAD_DIM).transpose(0, 2, 1, 3)
    k = (src @ wk + bk).reshape(B, L, N_HEADS, HEAD_DIM).transpose(0, 2, 1, 3)
    v = (src @ wv + bv).reshape(B, L, N_HEADS, HEAD_DIM).transpose(0, 2, 1, 3)
    energy = q @ k.transpose(0, 1, 3, 2) / jnp.sqrt(jnp.float32(HEAD_DIM))
    energy = jnp.where(src_mask == 0, NEG_INF, energy)
    attn = jax.nn.softmax(energy, axis=-1)
    x = (attn @ v).transpose(0, 2, 1, 3).reshape(B, L, D)
    x = x @ wo + bo
    src1 = ln(src + x)
    ff = jnp.maximum(src1 @ w1 + b1, 0.0) @ w2 + b2
    return ln(src1 + ff)


if __name__ == "__main__":
    key = jax.random.PRNGKey(0)
    k_src, k_par, k_src2 = jax.random.split(key, 3)
    params = init_params(k_par)

    # Case 1: B=2, L=8; padding mask on batch 1 (last 2 positions masked out)
    B, L = 2, 8
    src = jax.random.normal(k_src, (B, L, HID_DIM), jnp.float32)
    mask = jnp.ones((B, 1, 1, L), jnp.float32)
    mask = mask.at[1, :, :, L - 2:].set(0.0)

    out = jax.block_until_ready(encoder_layer(src, mask, params))
    ref = reference(src, mask, params)
    assert out.shape == (B, L, HID_DIM)
    # bf16 activations/output + approx reciprocal in the kernel vs. f32 reference
    err = float(jnp.max(jnp.abs(out - ref)))
    assert jnp.allclose(out, ref, atol=3e-2, rtol=3e-2), f"case1 mismatch, max abs err = {err}"

    # Case 2: B=5, L=16 with a forced small block -> exercises multi-block grid + batch padding
    B2, L2 = 5, 16
    src2 = jax.random.normal(k_src2, (B2, L2, HID_DIM), jnp.float32)
    mask2 = jnp.ones((B2, 1, 1, L2), jnp.float32)
    mask2 = mask2.at[0, :, :, L2 - 5:].set(0.0)
    mask2 = mask2.at[3, :, :, L2 - 9:].set(0.0)

    out2 = jax.block_until_ready(encoder_layer(src2, mask2, params, block_b=2))
    ref2 = reference(src2, mask2, params)
    assert out2.shape == (B2, L2, HID_DIM)
    err2 = float(jnp.max(jnp.abs(out2 - ref2)))
    assert jnp.allclose(out2, ref2, atol=3e-2, rtol=3e-2), f"case2 mismatch, max abs err = {err2}"

    print("KERNEL_OK")
</pallas_src>

<mosaic_0001>
module attributes {stable_mosaic.version = 11 : i64} {
  func.func @encoder_layer_kernel(%arg0: i32, %arg1: memref<2x1x8xf32, #tpu.memory_space<vmem>>, %arg2: memref<16x32xbf16, #tpu.memory_space<vmem>>, %arg3: memref<32x96xbf16, #tpu.memory_space<vmem>>, %arg4: memref<32x32xbf16, #tpu.memory_space<vmem>>, %arg5: memref<32x64xbf16, #tpu.memory_space<vmem>>, %arg6: memref<64x32xbf16, #tpu.memory_space<vmem>>, %arg7: memref<8x128xf32, #tpu.memory_space<vmem>>, %arg8: memref<16x32xbf16, #tpu.memory_space<vmem>>) attributes {dimension_semantics = [#tpu.dimension_semantics<parallel>], iteration_bounds = array<i64: 1>, scalar_prefetch = 0 : i64, scratch_operands = 0 : i64, tpu.core_type = #tpu.core_type<tc>, window_params = [{transform_indices = @transform_0, window_bounds = array<i64: 2, 1, 8>}, {transform_indices = @transform_1, window_bounds = array<i64: 16, 32>}, {pipeline_mode = #tpu.pipeline_mode<synchronous>, transform_indices = @transform_2, window_bounds = array<i64: 32, 96>}, {pipeline_mode = #tpu.pipeline_mode<synchronous>, transform_indices = @transform_3, window_bounds = array<i64: 32, 32>}, {pipeline_mode = #tpu.pipeline_mode<synchronous>, transform_indices = @transform_4, window_bounds = array<i64: 32, 64>}, {pipeline_mode = #tpu.pipeline_mode<synchronous>, transform_indices = @transform_5, window_bounds = array<i64: 64, 32>}, {pipeline_mode = #tpu.pipeline_mode<synchronous>, transform_indices = @transform_6, window_bounds = array<i64: 8, 128>}, {transform_indices = @transform_7, window_bounds = array<i64: 16, 32>}]} {
    %c0 = arith.constant 0 : index
    %c0_0 = arith.constant 0 : index
    %0 = vector.load %arg2[%c0, %c0_0] : memref<16x32xbf16, #tpu.memory_space<vmem>>, vector<16x32xbf16>
    %1 = arith.extf %0 : vector<16x32xbf16> to vector<16x32xf32>
    %c0_1 = arith.constant 0 : index
    %c0_2 = arith.constant 0 : index
    %2 = vector.load %arg7[%c0_1, %c0_2] : memref<8x128xf32, #tpu.memory_space<vmem>>, vector<8x128xf32>
    %3 = vector.extract_strided_slice %2 {offsets = [0, 0], sizes = [1, 96], strides = [1, 1]} : vector<8x128xf32> to vector<1x96xf32>
    %4 = vector.extract_strided_slice %2 {offsets = [1, 0], sizes = [1, 32], strides = [1, 1]} : vector<8x128xf32> to vector<1x32xf32>
    %5 = vector.extract_strided_slice %2 {offsets = [2, 0], sizes = [1, 32], strides = [1, 1]} : vector<8x128xf32> to vector<1x32xf32>
    %6 = vector.extract_strided_slice %2 {offsets = [3, 0], sizes = [1, 32], strides = [1, 1]} : vector<8x128xf32> to vector<1x32xf32>
    %7 = vector.extract_strided_slice %2 {offsets = [4, 0], sizes = [1, 64], strides = [1, 1]} : vector<8x128xf32> to vector<1x64xf32>
    %8 = vector.extract_strided_slice %2 {offsets = [5, 0], sizes = [1, 32], strides = [1, 1]} : vector<8x128xf32> to vector<1x32xf32>
    %c0_3 = arith.constant 0 : index
    %c0_4 = arith.constant 0 : index
    %9 = vector.load %arg3[%c0_3, %c0_4] : memref<32x96xbf16, #tpu.memory_space<vmem>>, vector<32x96xbf16>
    %cst = arith.constant dense<0.000000e+00> : vector<16x96xf32>
    %10 = tpu.matmul %0, %9, %cst {dimension_numbers = #tpu.dot_dimension_numbers<[1], [0], [0], [1], [0, 0, 1, 1], [], []>} : vector<16x32xbf16>, vector<32x96xbf16>, vector<16x96xf32> -> vector<16x96xf32>
    %11 = vector.broadcast %3 : vector<1x96xf32> to vector<16x96xf32>
    %12 = arith.addf %10, %11 : vector<16x96xf32>
    %13 = vector.shape_cast %12 : vector<16x96xf32> to vector<2x8x96xf32>
    %14 = arith.truncf %13 : vector<2x8x96xf32> to vector<2x8x96xbf16>
    %c0_5 = arith.constant 0 : index
    %c0_6 = arith.constant 0 : index
    %c0_7 = arith.constant 0 : index
    %15 = vector.load %arg1[%c0_5, %c0_6, %c0_7] : memref<2x1x8xf32, #tpu.memory_space<vmem>>, vector<2x1x8xf32>
    %cst_8 = arith.constant 0.000000e+00 : f32
    %16 = vector.broadcast %cst_8 : f32 to vector<2x1x8xf32>
    %17 = arith.cmpf oeq, %15, %16 : vector<2x1x8xf32>
    %cst_9 = arith.constant -1.000000e+10 : f32
    %cst_10 = arith.constant 0.000000e+00 : f32
    %18 = vector.broadcast %cst_9 : f32 to vector<2x1x8xf32>
    %19 = vector.broadcast %cst_10 : f32 to vector<2x1x8xf32>
    %20 = arith.select %17, %18, %19 : vector<2x1x8xi1>, vector<2x1x8xf32>
    %21 = tpu.concatenate %20, %20, %20, %20 in 0 : vector<2x1x8xf32>, vector<2x1x8xf32>, vector<2x1x8xf32>, vector<2x1x8xf32> -> vector<8x1x8xf32>
    %22 = vector.extract_strided_slice %14 {offsets = [0, 0, 0], sizes = [2, 8, 8], strides = [1, 1, 1]} : vector<2x8x96xbf16> to vector<2x8x8xbf16>
    %23 = vector.extract_strided_slice %14 {offsets = [0, 0, 8], sizes = [2, 8, 8], strides = [1, 1, 1]} : vector<2x8x96xbf16> to vector<2x8x8xbf16>
    %24 = vector.extract_strided_slice %14 {offsets = [0, 0, 16], sizes = [2, 8, 8], strides = [1, 1, 1]} : vector<2x8x96xbf16> to vector<2x8x8xbf16>
    %25 = vector.extract_strided_slice %14 {offsets = [0, 0, 24], sizes = [2, 8, 8], strides = [1, 1, 1]} : vector<2x8x96xbf16> to vector<2x8x8xbf16>
    %26 = tpu.concatenate %22, %23, %24, %25 in 0 : vector<2x8x8xbf16>, vector<2x8x8xbf16>, vector<2x8x8xbf16>, vector<2x8x8xbf16> -> vector<8x8x8xbf16>
    %27 = vector.extract_strided_slice %14 {offsets = [0, 0, 32], sizes = [2, 8, 8], strides = [1, 1, 1]} : vector<2x8x96xbf16> to vector<2x8x8xbf16>
    %28 = vector.extract_strided_slice %14 {offsets = [0, 0, 40], sizes = [2, 8, 8], strides = [1, 1, 1]} : vector<2x8x96xbf16> to vector<2x8x8xbf16>
    %29 = vector.extract_strided_slice %14 {offsets = [0, 0, 48], sizes = [2, 8, 8], strides = [1, 1, 1]} : vector<2x8x96xbf16> to vector<2x8x8xbf16>
    %30 = vector.extract_strided_slice %14 {offsets = [0, 0, 56], sizes = [2, 8, 8], strides = [1, 1, 1]} : vector<2x8x96xbf16> to vector<2x8x8xbf16>
    %31 = tpu.concatenate %27, %28, %29, %30 in 0 : vector<2x8x8xbf16>, vector<2x8x8xbf16>, vector<2x8x8xbf16>, vector<2x8x8xbf16> -> vector<8x8x8xbf16>
    %32 = vector.extract_strided_slice %14 {offsets = [0, 0, 64], sizes = [2, 8, 8], strides = [1, 1, 1]} : vector<2x8x96xbf16> to vector<2x8x8xbf16>
    %33 = vector.extract_strided_slice %14 {offsets = [0, 0, 72], sizes = [2, 8, 8], strides = [1, 1, 1]} : vector<2x8x96xbf16> to vector<2x8x8xbf16>
    %34 = vector.extract_strided_slice %14 {offsets = [0, 0, 80], sizes = [2, 8, 8], strides = [1, 1, 1]} : vector<2x8x96xbf16> to vector<2x8x8xbf16>
    %35 = vector.extract_strided_slice %14 {offsets = [0, 0, 88], sizes = [2, 8, 8], strides = [1, 1, 1]} : vector<2x8x96xbf16> to vector<2x8x8xbf16>
    %36 = tpu.concatenate %32, %33, %34, %35 in 0 : vector<2x8x8xbf16>, vector<2x8x8xbf16>, vector<2x8x8xbf16>, vector<2x8x8xbf16> -> vector<8x8x8xbf16>
    "tpu.trace_start"() <{level = 10 : i32, message = "bqd,bkd->bqk"}> : () -> ()
    %cst_11 = arith.constant dense<0.000000e+00> : vector<8x8x8xf32>
    %37 = tpu.matmul %26, %31, %cst_11 {dimension_numbers = #tpu.dot_dimension_numbers<[2], [2], [1], [1], [0, 0, 0, 1, 1, 1], [0], [0]>} : vector<8x8x8xbf16>, vector<8x8x8xbf16>, vector<8x8x8xf32> -> vector<8x8x8xf32>
    "tpu.trace_stop"() : () -> ()
    %38 = vector.broadcast %21 : vector<8x1x8xf32> to vector<8x8x8xf32>
    %39 = arith.addf %37, %38 : vector<8x8x8xf32>
    %cst_12 = arith.constant dense<0xFF800000> : vector<8x8xf32>
    %40 = vector.multi_reduction <maximumf>, %39, %cst_12 [2] : vector<8x8x8xf32> to vector<8x8xf32>
    %41 = vector.shape_cast %40 : vector<8x8xf32> to vector<8x8x1xf32>
    %42 = vector.broadcast %41 : vector<8x8x1xf32> to vector<8x8x8xf32>
    %43 = arith.subf %39, %42 : vector<8x8x8xf32>
    %44 = math.exp %43 : vector<8x8x8xf32>
    %cst_13 = arith.constant dense<0.000000e+00> : vector<8x8xf32>
    %45 = vector.multi_reduction <add>, %44, %cst_13 [2] : vector<8x8x8xf32> to vector<8x8xf32>
    %46 = vector.shape_cast %45 : vector<8x8xf32> to vector<8x8x1xf32>
    %47 = tpu.reciprocal %46 {approx = true} : vector<8x8x1xf32> -> vector<8x8x1xf32>
    %48 = vector.broadcast %47 : vector<8x8x1xf32> to vector<8x8x8xf32>
    %49 = arith.mulf %44, %48 : vector<8x8x8xf32>
    %50 = arith.truncf %49 : vector<8x8x8xf32> to vector<8x8x8xbf16>
    "tpu.trace_start"() <{level = 10 : i32, message = "bqk,bkd->bqd"}> : () -> ()
    %cst_14 = arith.constant dense<0.000000e+00> : vector<8x8x8xf32>
    %51 = tpu.matmul %50, %36, %cst_14 {dimension_numbers = #tpu.dot_dimension_numbers<[2], [1], [1], [2], [0, 0, 0, 1, 1, 2], [0], [0]>} : vector<8x8x8xbf16>, vector<8x8x8xbf16>, vector<8x8x8xf32> -> vector<8x8x8xf32>
    "tpu.trace_stop"() : () -> ()
    %52 = vector.extract_strided_slice %51 {offsets = [0, 0, 0], sizes = [2, 8, 8], strides = [1, 1, 1]} : vector<8x8x8xf32> to vector<2x8x8xf32>
    %53 = vector.extract_strided_slice %51 {offsets = [2, 0, 0], sizes = [2, 8, 8], strides = [1, 1, 1]} : vector<8x8x8xf32> to vector<2x8x8xf32>
    %54 = vector.extract_strided_slice %51 {offsets = [4, 0, 0], sizes = [2, 8, 8], strides = [1, 1, 1]} : vector<8x8x8xf32> to vector<2x8x8xf32>
    %55 = vector.extract_strided_slice %51 {offsets = [6, 0, 0], sizes = [2, 8, 8], strides = [1, 1, 1]} : vector<8x8x8xf32> to vector<2x8x8xf32>
    %56 = tpu.concatenate %52, %53, %54, %55 in 2 : vector<2x8x8xf32>, vector<2x8x8xf32>, vector<2x8x8xf32>, vector<2x8x8xf32> -> vector<2x8x32xf32>
    %57 = vector.shape_cast %56 : vector<2x8x32xf32> to vector<16x32xf32>
    %58 = arith.truncf %57 : vector<16x32xf32> to vector<16x32xbf16>
    %c0_15 = arith.constant 0 : index
    %c0_16 = arith.constant 0 : index
    %59 = vector.load %arg4[%c0_15, %c0_16] : memref<32x32xbf16, #tpu.memory_space<vmem>>, vector<32x32xbf16>
    %cst_17 = arith.constant dense<0.000000e+00> : vector<16x32xf32>
    %60 = tpu.matmul %58, %59, %cst_17 {dimension_numbers = #tpu.dot_dimension_numbers<[1], [0], [0], [1], [0, 0, 1, 1], [], []>} : vector<16x32xbf16>, vector<32x32xbf16>, vector<16x32xf32> -> vector<16x32xf32>
    %61 = vector.broadcast %4 : vector<1x32xf32> to vector<16x32xf32>
    %62 = arith.addf %60, %61 : vector<16x32xf32>
    %63 = arith.addf %1, %62 : vector<16x32xf32>
    %cst_18 = arith.constant dense<0.000000e+00> : vector<16xf32>
    %64 = vector.multi_reduction <add>, %63, %cst_18 [1] : vector<16x32xf32> to vector<16xf32>
    %65 = vector.shape_cast %64 : vector<16xf32> to vector<16x1xf32>
    %cst_19 = arith.constant 3.200000e+01 : f32
    %66 = vector.broadcast %cst_19 : f32 to vector<16x1xf32>
    %67 = arith.divf %65, %66 : vector<16x1xf32>
    %68 = vector.broadcast %67 : vector<16x1xf32> to vector<16x32xf32>
    %69 = arith.subf %63, %68 : vector<16x32xf32>
    %70 = arith.mulf %69, %69 : vector<16x32xf32>
    %cst_20 = arith.constant dense<0.000000e+00> : vector<16xf32>
    %71 = vector.multi_reduction <add>, %70, %cst_20 [1] : vector<16x32xf32> to vector<16xf32>
    %72 = vector.shape_cast %71 : vector<16xf32> to vector<16x1xf32>
    %cst_21 = arith.constant 3.200000e+01 : f32
    %73 = vector.broadcast %cst_21 : f32 to vector<16x1xf32>
    %74 = arith.divf %72, %73 : vector<16x1xf32>
    %75 = vector.broadcast %67 : vector<16x1xf32> to vector<16x32xf32>
    %76 = arith.subf %63, %75 : vector<16x32xf32>
    %cst_22 = arith.constant 9.99999974E-6 : f32
    %77 = vector.broadcast %cst_22 : f32 to vector<16x1xf32>
    %78 = arith.addf %74, %77 : vector<16x1xf32>
    %79 = math.rsqrt %78 : vector<16x1xf32>
    %80 = vector.broadcast %79 : vector<16x1xf32> to vector<16x32xf32>
    %81 = arith.mulf %76, %80 : vector<16x32xf32>
    %82 = vector.broadcast %5 : vector<1x32xf32> to vector<16x32xf32>
    %83 = arith.mulf %81, %82 : vector<16x32xf32>
    %84 = vector.broadcast %6 : vector<1x32xf32> to vector<16x32xf32>
    %85 = arith.addf %83, %84 : vector<16x32xf32>
    %86 = arith.truncf %85 : vector<16x32xf32> to vector<16x32xbf16>
    %c0_23 = arith.constant 0 : index
    %c0_24 = arith.constant 0 : index
    %87 = vector.load %arg5[%c0_23, %c0_24] : memref<32x64xbf16, #tpu.memory_space<vmem>>, vector<32x64xbf16>
    %cst_25 = arith.constant dense<0.000000e+00> : vector<16x64xf32>
    %88 = tpu.matmul %86, %87, %cst_25 {dimension_numbers = #tpu.dot_dimension_numbers<[1], [0], [0], [1], [0, 0, 1, 1], [], []>} : vector<16x32xbf16>, vector<32x64xbf16>, vector<16x64xf32> -> vector<16x64xf32>
    %89 = vector.broadcast %7 : vector<1x64xf32> to vector<16x64xf32>
    %90 = arith.addf %88, %89 : vector<16x64xf32>
    %cst_26 = arith.constant 0.000000e+00 : f32
    %91 = vector.broadcast %cst_26 : f32 to vector<16x64xf32>
    %92 = arith.maximumf %90, %91 : vector<16x64xf32>
    %93 = arith.truncf %92 : vector<16x64xf32> to vector<16x64xbf16>
    %c0_27 = arith.constant 0 : index
    %c0_28 = arith.constant 0 : index
    %94 = vector.load %arg6[%c0_27, %c0_28] : memref<64x32xbf16, #tpu.memory_space<vmem>>, vector<64x32xbf16>
    %cst_29 = arith.constant dense<0.000000e+00> : vector<16x32xf32>
    %95 = tpu.matmul %93, %94, %cst_29 {dimension_numbers = #tpu.dot_dimension_numbers<[1], [0], [0], [1], [0, 0, 1, 1], [], []>} : vector<16x64xbf16>, vector<64x32xbf16>, vector<16x32xf32> -> vector<16x32xf32>
    %96 = vector.broadcast %8 : vector<1x32xf32> to vector<16x32xf32>
    %97 = arith.addf %95, %96 : vector<16x32xf32>
    %98 = arith.addf %85, %97 : vector<16x32xf32>
    %cst_30 = arith.constant dense<0.000000e+00> : vector<16xf32>
    %99 = vector.multi_reduction <add>, %98, %cst_30 [1] : vector<16x32xf32> to vector<16xf32>
    %100 = vector.shape_cast %99 : vector<16xf32> to vector<16x1xf32>
    %cst_31 = arith.constant 3.200000e+01 : f32
    %101 = vector.broadcast %cst_31 : f32 to vector<16x1xf32>
    %102 = arith.divf %100, %101 : vector<16x1xf32>
    %103 = vector.broadcast %102 : vector<16x1xf32> to vector<16x32xf32>
    %104 = arith.subf %98, %103 : vector<16x32xf32>
    %105 = arith.mulf %104, %104 : vector<16x32xf32>
    %cst_32 = arith.constant dense<0.000000e+00> : vector<16xf32>
    %106 = vector.multi_reduction <add>, %105, %cst_32 [1] : vector<16x32xf32> to vector<16xf32>
    %107 = vector.shape_cast %106 : vector<16xf32> to vector<16x1xf32>
    %cst_33 = arith.constant 3.200000e+01 : f32
    %108 = vector.broadcast %cst_33 : f32 to vector<16x1xf32>
    %109 = arith.divf %107, %108 : vector<16x1xf32>
    %110 = vector.broadcast %102 : vector<16x1xf32> to vector<16x32xf32>
    %111 = arith.subf %98, %110 : vector<16x32xf32>
    %cst_34 = arith.constant 9.99999974E-6 : f32
    %112 = vector.broadcast %cst_34 : f32 to vector<16x1xf32>
    %113 = arith.addf %109, %112 : vector<16x1xf32>
    %114 = math.rsqrt %113 : vector<16x1xf32>
    %115 = vector.broadcast %114 : vector<16x1xf32> to vector<16x32xf32>
    %116 = arith.mulf %111, %115 : vector<16x32xf32>
    %117 = vector.broadcast %5 : vector<1x32xf32> to vector<16x32xf32>
    %118 = arith.mulf %116, %117 : vector<16x32xf32>
    %119 = vector.broadcast %6 : vector<1x32xf32> to vector<16x32xf32>
    %120 = arith.addf %118, %119 : vector<16x32xf32>
    %121 = arith.truncf %120 : vector<16x32xf32> to vector<16x32xbf16>
    %c0_35 = arith.constant 0 : index
    %c0_36 = arith.constant 0 : index
    %122 = vector.load %arg8[%c0_35, %c0_36] : memref<16x32xbf16, #tpu.memory_space<vmem>>, vector<16x32xbf16>
    tpu.vector_store %arg8[%c0_35, %c0_36], %121 {strides = array<i32>} : memref<16x32xbf16, #tpu.memory_space<vmem>>, vector<16x32xbf16>,
    return
  }
  func.func @transform_0(%arg0: i32) -> (i32, i32, i32) {
    %c0_i32 = arith.constant 0 : i32
    %c0_i32_0 = arith.constant 0 : i32
    %c0_i32_1 = arith.constant 0 : i32
    return %arg0, %c0_i32, %c0_i32_0 : i32, i32, i32
  }
  func.func @transform_1(%arg0: i32) -> (i32, i32) {
    %c0_i32 = arith.constant 0 : i32
    %c0_i32_0 = arith.constant 0 : i32
    return %arg0, %c0_i32 : i32, i32
  }
  func.func @transform_2(%arg0: i32) -> (i32, i32) {
    %c0_i32 = arith.constant 0 : i32
    %c0_i32_0 = arith.constant 0 : i32
    %c0_i32_1 = arith.constant 0 : i32
    return %c0_i32, %c0_i32_0 : i32, i32
  }
  func.func @transform_3(%arg0: i32) -> (i32, i32) {
    %c0_i32 = arith.constant 0 : i32
    %c0_i32_0 = arith.constant 0 : i32
    %c0_i32_1 = arith.constant 0 : i32
    return %c0_i32, %c0_i32_0 : i32, i32
  }
  func.func @transform_4(%arg0: i32) -> (i32, i32) {
    %c0_i32 = arith.constant 0 : i32
    %c0_i32_0 = arith.constant 0 : i32
    %c0_i32_1 = arith.constant 0 : i32
    return %c0_i32, %c0_i32_0 : i32, i32
  }
  func.func @transform_5(%arg0: i32) -> (i32, i32) {
    %c0_i32 = arith.constant 0 : i32
    %c0_i32_0 = arith.constant 0 : i32
    %c0_i32_1 = arith.constant 0 : i32
    return %c0_i32, %c0_i32_0 : i32, i32
  }
  func.func @transform_6(%arg0: i32) -> (i32, i32) {
    %c0_i32 = arith.constant 0 : i32
    %c0_i32_0 = arith.constant 0 : i32
    %c0_i32_1 = arith.constant 0 : i32
    return %c0_i32, %c0_i32_0 : i32, i32
  }
  func.func @transform_7(%arg0: i32) -> (i32, i32) {
    %c0_i32 = arith.constant 0 : i32
    %c0_i32_0 = arith.constant 0 : i32
    return %arg0, %c0_i32 : i32, i32
  }
}

</mosaic_0001>

<llo_original>
// kernel: tpu_custom_call.1
$region0: #{tpu_custom_call.1}
  #allocation0 [shape = 'u32[]', space=smem, size = 0x4, offset = 0x4, fixed_abs, tag = 'smem constant byte address 0x4 - core index']
  #allocation1 [shape = 'u32[72,128]{1,0:T(1,128)}', space=vmem, size = 0x9000, scoped, tag = 'internal scratch']
  %s0 = inlined_call_operand.hbm [shape: f32[2,1,8], index: 0, kind: input, shape index: {}]
  %s1 = inlined_call_operand.hbm [shape: bf16[16,32], index: 1, kind: input, shape index: {}]
  %s2 = inlined_call_operand.vmem [shape: bf16[32,96], index: 2, kind: input, shape index: {}]
  %s3 = inlined_call_operand.vmem [shape: bf16[32,32], index: 3, kind: input, shape index: {}]
  %s4 = inlined_call_operand.vmem [shape: bf16[32,64], index: 4, kind: input, shape index: {}]
  %s5 = inlined_call_operand.vmem [shape: bf16[64,32], index: 5, kind: input, shape index: {}]
  %s6 = inlined_call_operand.hbm [shape: f32[8,128], index: 6, kind: input, shape index: {}]
  %s7 = inlined_call_operand.hbm [shape: bf16[16,32], index: 7, kind: output, shape index: {}]
  %s8 = sld [smem:[#allocation0]]
  $region50: #{tpu_custom_call.1} parent=0
    _
  %s10 = ssub.s32 1, %s8
  %s11 = scalar_select 0, %s10, %s8
  $region1: #{tpu_custom_call.1} parent=0
    #allocation2 [shape = 'u8[1024]{0}', space=vmem, size = 0x400, scoped, tag = 'input window, operand 0, single buffered']
    #allocation3 [shape = 's32[1]{0}', space=sflag, size = 0x4, scoped, tag = 'scoped memory for tpu_custom_call.1']
    #allocation4 [shape = 's32[1]{0}', space=sflag, size = 0x4, scoped, tag = 'scoped memory for tpu_custom_call.1']
    #allocation5 [shape = 'u8[4096]{0}', space=vmem, size = 0x1000, scoped, tag = 'input window, operand 1, single buffered']
    #allocation6 [shape = 's32[1]{0}', space=sflag, size = 0x4, scoped, tag = 'scoped memory for tpu_custom_call.1']
    #allocation7 [shape = 'u8[4096]{0}', space=vmem, size = 0x1000, scoped, tag = 'input window, operand 6, single buffered']
    #allocation8 [shape = 'u8[4096]{0}', space=vmem, size = 0x1000, scoped, tag = 'output window, operand 0, single buffered']
    %12 = vsyncpa [#allocation3], 0
    %13 = vsyncpa [#allocation6], 0
    %14 = vsyncpa [#allocation4], 0
    // Predicated region
    $region2: #{tpu_custom_call.1} parent=1 // pred_check
      _
    $region3: #{tpu_custom_call.1} parent=1 // pred_check_branch
      %16 = sbr.rel (0) target = $region5
    $region4: #{tpu_custom_call.1} parent=1 // pred_region
      %18 = vsyncadd [#allocation3], 0
      %s19 = sshll.u32 %s0, 4
      %s20 = int_to_ptr.hbm [resolvable:$true] %s19
      %s21 = sshll.u32 [#allocation2], 4
      %s22 = int_to_ptr.vmem [resolvable:$true] %s21
      %27 = dma.hbm_to_vmem [thread:$0]  %s20, 32, %s22, [#allocation3], 16, 16, 1
    $region5: #{tpu_custom_call.1} parent=1 // pred_fallthru
      _
    // Predicated region
    $region6: #{tpu_custom_call.1} parent=1 // pred_check
      _
    $region7: #{tpu_custom_call.1} parent=1 // pred_check_branch
      %29 = sbr.rel (0) target = $region9
    $region8: #{tpu_custom_call.1} parent=1 // pred_region
      %31 = vsyncadd [#allocation6], 0
      %s32 = sshll.u32 %s1, 4
      %s33 = int_to_ptr.hbm [resolvable:$true] %s32
      %s34 = sshll.u32 [#allocation5], 4
      %s35 = int_to_ptr.vmem [resolvable:$true] %s34
      %40 = dma.hbm_to_vmem [thread:$0]  %s33, 128, %s35, [#allocation6], 64, 64, 4
    $region9: #{tpu_custom_call.1} parent=1 // pred_fallthru
      _
    // Predicated region
    $region10: #{tpu_custom_call.1} parent=1 // pred_check
      _
    $region11: #{tpu_custom_call.1} parent=1 // pred_check_branch
      %42 = sbr.rel (0) target = $region13
    $region12: #{tpu_custom_call.1} parent=1 // pred_region
      _
    $region13: #{tpu_custom_call.1} parent=1 // pred_fallthru
      _
    // Predicated region
    $region14: #{tpu_custom_call.1} parent=1 // pred_check
      _
    $region15: #{tpu_custom_call.1} parent=1 // pred_check_branch
      %44 = sbr.rel (0) target = $region17
    $region16: #{tpu_custom_call.1} parent=1 // pred_region
      _
    $region17: #{tpu_custom_call.1} parent=1 // pred_fallthru
      _
    // Predicated region
    $region18: #{tpu_custom_call.1} parent=1 // pred_check
      _
    $region19: #{tpu_custom_call.1} parent=1 // pred_check_branch
      %46 = sbr.rel (0) target = $region21
    $region20: #{tpu_custom_call.1} parent=1 // pred_region
      _
    $region21: #{tpu_custom_call.1} parent=1 // pred_fallthru
      _
    // Predicated region
    $region22: #{tpu_custom_call.1} parent=1 // pred_check
      _
    $region23: #{tpu_custom_call.1} parent=1 // pred_check_branch
      %48 = sbr.rel (0) target = $region25
    $region24: #{tpu_custom_call.1} parent=1 // pred_region
      _
    $region25: #{tpu_custom_call.1} parent=1 // pred_fallthru
      _
    // Predicated region
    $region26: #{tpu_custom_call.1} parent=1 // pred_check
      _
    $region27: #{tpu_custom_call.1} parent=1 // pred_check_branch
      %50 = sbr.rel (0) target = $region29
    $region28: #{tpu_custom_call.1} parent=1 // pred_region
      %52 = vsyncadd [#allocation6], 0
      %s54 = sshll.u32 %s6, 4
      %s55 = int_to_ptr.hbm [resolvable:$true] %s54
      %s56 = sshll.u32 [#allocation7], 4
      %s57 = int_to_ptr.vmem [resolvable:$true] %s56
      %59 = dma.hbm_to_vmem [thread:$0]  %s55, 128, %s57, [#allocation6]
    $region29: #{tpu_custom_call.1} parent=1 // pred_fallthru
      _
    // Predicated region
    $region30: #{tpu_custom_call.1} parent=1 // pred_check
      _
    $region31: #{tpu_custom_call.1} parent=1 // pred_check_branch
      %61 = sbr.rel (0) target = $region33
    $region32: #{tpu_custom_call.1} parent=1 // pred_region
      %63 = dma.done [#allocation3], 32
    $region33: #{tpu_custom_call.1} parent=1 // pred_fallthru
      _
    // Predicated region
    $region34: #{tpu_custom_call.1} parent=1 // pred_check
      _
    $region35: #{tpu_custom_call.1} parent=1 // pred_check_branch
      %65 = sbr.rel (0) target = $region37
    $region36: #{tpu_custom_call.1} parent=1 // pred_region
      %67 = dma.done [#allocation6], 128
    $region37: #{tpu_custom_call.1} parent=1 // pred_fallthru
      _
    // Predicated region
    $region38: #{tpu_custom_call.1} parent=1 // pred_check
      _
    $region39: #{tpu_custom_call.1} parent=1 // pred_check_branch
      %69 = sbr.rel (0) target = $region41
    $region40: #{tpu_custom_call.1} parent=1 // pred_region
      %71 = dma.done [#allocation6], 128
    $region41: #{tpu_custom_call.1} parent=1 // pred_fallthru
      _
    %v73 = vld [vmem:[#allocation5] sm:$0xf]
    %v74 = vld [vmem:[#allocation5 + $0x4] sm:$0xf]
    %v75 = vunpack.c.l.bf16 %v73
    %v76 = vunpack.c.l.bf16 %v74
    %v77 = vld [vmem:[#allocation7] sm:$0xff]
    %v78 = vld [vmem:[%s2] sm:$0xf]
    %v79 = vld [vmem:[%s2 + $0x4] sm:$0xf]
    %v80 = vld [vmem:[%s2 + $0x8] sm:$0xf]
    %v81 = vld [vmem:[%s2 + $0xc] sm:$0xf]
    %v82 = vperm.slane %v77, 0
    %v85 = vunpack.c.l.b16 %v73
    %v86 = vunpack.c.l.b16 %v74
    %v87 = vpack.c.b16 %v86, %v85
    %v92 = vunpack.c.l.b16 %v78
    %v93 = vunpack.c.l.b16 %v79
    %v94 = vunpack.c.l.b16 %v80
    %v95 = vunpack.c.l.b16 %v81
    %v96 = vpack.c.b16 %v93, %v92
    %v97 = vpack.c.b16 %v95, %v94
    %vm100 = vcmask 261120
    %v102 = vsel %vm100, %v87, 0
    %104 = vmatpush.bf16.msra.mxu0 0
    %105 = vmatpush.bf16.msra.mxu0 0
    %106 = vmatpush.bf16.msra.mxu0 0
    %107 = vmatpush.bf16.msra.mxu0 0
    %108 = vmatpush.bf16.msra.mxu0 0
    %109 = vmatpush.bf16.msra.mxu0 0
    %110 = vmatpush.bf16.msra.mxu0 %v97
    %111 = vmatpush.bf16.msra.mxu0 %v96
    %112 = vmatmul.bf16.gmra.mxu0 %v102
    %v113 = vpop.f32.mrf.mxu0
    %v114 = vadd.f32 %v82, %v113
    %v115 = vpop.f32.mrf.mxu0
    %v116 = vadd.f32 %v82, %v115
    %117 = vdwg.mxu0
    %v118 = vpack.c.bf16 %v114, %v114
    %v119 = vpack.c.bf16 %v116, %v116
    %v120 = vld [vmem:[#allocation2] sm:$0x1]
    %v121 = vld [vmem:[#allocation2 + $0x1] sm:$0x1]
    %vm122 = vcmp.eq.f32.partialorder %v120, 0.0
    %vm123 = vcmp.eq.f32.partialorder %v121, 0.0
    %v124 = vsel %vm122, -1e+10, 0.0
    %v125 = vsel %vm123, -1e+10, 0.0
    %128 = vrot.lane.b32.xlu0 %v118, 120
    %v129 = vpop.permute.xlu0 %128
    %130 = vrot.lane.b32.xlu0 %v119, 120
    %v131 = vpop.permute.xlu0 %130
    %132 = vrot.lane.b32.xlu0 %v118, 112
    %v133 = vpop.permute.xlu0 %132
    %134 = vrot.lane.b32.xlu0 %v119, 112
    %v135 = vpop.permute.xlu0 %134
    %136 = vrot.lane.b32.xlu0 %v118, 104
    %v137 = vpop.permute.xlu0 %136
    %138 = vrot.lane.b32.xlu0 %v119, 104
    %v139 = vpop.permute.xlu0 %138
    %v142 = vperm.slane %v124, 0
    %v143 = vperm.slane %v125, 0
    %v146 = vunpack.c.l.b16 %v118
    %v147 = vpack.c.b16 %v146, %v146
    %148 = vrot.lane.b32.xlu0 %v147, 96
    %v149 = vpop.permute.xlu0 %148
    %vm150 = vcmask 64512
    %v152 = vsel %vm150, %v118, 0
    %v155 = vsel %vm150, %v149, 0
    %157 = vmatpush.bf16.xpose.msra.mxu0 0
    %158 = vmatpush.bf16.xpose.msra.mxu0 0
    %159 = vmatpush.bf16.xpose.msra.mxu0 0
    %160 = vmatpush.bf16.xpose.msra.mxu0 0
    %161 = vmatpush.bf16.xpose.msra.mxu0 0
    %162 = vmatpush.bf16.xpose.msra.mxu0 0
    %163 = vmatpush.bf16.xpose.msra.mxu0 0
    %164 = vmatpush.bf16.xpose.msra.mxu0 %v155
    %165 = vmatmul.bf16.gmra.mxu0 %v152
    %v166 = vpop.f32.mrf.mxu0
    %v167 = vadd.f32 %v142, %v166
    %v168 = vpop.f32.mrf.mxu0
    %169 = vdwg.mxu0
    %v170 = vunpack.c.l.b16 %v119
    %v171 = vpack.c.b16 %v170, %v170
    %172 = vrot.lane.b32.xlu0 %v171, 96
    %v173 = vpop.permute.xlu0 %172
    %v175 = vsel %vm150, %v119, 0
    %v178 = vsel %vm150, %v173, 0
    %180 = vmatpush.bf16.xpose.msra.mxu0 0
    %181 = vmatpush.bf16.xpose.msra.mxu0 0
    %182 = vmatpush.bf16.xpose.msra.mxu0 0
    %183 = vmatpush.bf16.xpose.msra.mxu0 0
    %184 = vmatpush.bf16.xpose.msra.mxu0 0
    %185 = vmatpush.bf16.xpose.msra.mxu0 0
    %186 = vmatpush.bf16.xpose.msra.mxu0 0
    %187 = vmatpush.bf16.xpose.msra.mxu0 %v178
    %188 = vmatmul.bf16.gmra.mxu0 %v175
    %v189 = vpop.f32.mrf.mxu0
    %v190 = vadd.f32 %v143, %v189
    %v191 = vpop.f32.mrf.mxu0
    %192 = vdwg.mxu0
    %v193 = vunpack.c.l.b16 %v129
    %v194 = vpack.c.b16 %v193, %v193
    %195 = vrot.lane.b32.xlu0 %v194, 96
    %v196 = vpop.permute.xlu0 %195
    %v198 = vsel %vm150, %v129, 0
    %v201 = vsel %vm150, %v196, 0
    %203 = vmatpush.bf16.xpose.msra.mxu0 0
    %204 = vmatpush.bf16.xpose.msra.mxu0 0
    %205 = vmatpush.bf16.xpose.msra.mxu0 0
    %206 = vmatpush.bf16.xpose.msra.mxu0 0
    %207 = vmatpush.bf16.xpose.msra.mxu0 0
    %208 = vmatpush.bf16.xpose.msra.mxu0 0
    %209 = vmatpush.bf16.xpose.msra.mxu0 0
    %210 = vmatpush.bf16.xpose.msra.mxu0 %v201
    %211 = vmatmul.bf16.gmra.mxu0 %v198
    %v212 = vpop.f32.mrf.mxu0
    %v213 = vadd.f32 %v142, %v212
    %v214 = vpop.f32.mrf.mxu0
    %215 = vdwg.mxu0
    %v216 = vunpack.c.l.b16 %v131
    %v217 = vpack.c.b16 %v216, %v216
    %218 = vrot.lane.b32.xlu0 %v217, 96
    %v219 = vpop.permute.xlu0 %218
    %v221 = vsel %vm150, %v131, 0
    %v224 = vsel %vm150, %v219, 0
    %226 = vmatpush.bf16.xpose.msra.mxu0 0
    %227 = vmatpush.bf16.xpose.msra.mxu0 0
    %228 = vmatpush.bf16.xpose.msra.mxu0 0
    %229 = vmatpush.bf16.xpose.msra.mxu0 0
    %230 = vmatpush.bf16.xpose.msra.mxu0 0
    %231 = vmatpush.bf16.xpose.msra.mxu0 0
    %232 = vmatpush.bf16.xpose.msra.mxu0 0
    %233 = vmatpush.bf16.xpose.msra.mxu0 %v224
    %234 = vmatmul.bf16.gmra.mxu0 %v221
    %v235 = vpop.f32.mrf.mxu0
    %v236 = vadd.f32 %v143, %v235
    %v237 = vpop.f32.mrf.mxu0
    %238 = vdwg.mxu0
    %v239 = vunpack.c.l.b16 %v133
    %v240 = vpack.c.b16 %v239, %v239
    %241 = vrot.lane.b32.xlu0 %v240, 96
    %v242 = vpop.permute.xlu0 %241
    %v244 = vsel %vm150, %v133, 0
    %v247 = vsel %vm150, %v242, 0
    %249 = vmatpush.bf16.xpose.msra.mxu0 0
    %250 = vmatpush.bf16.xpose.msra.mxu0 0
    %251 = vmatpush.bf16.xpose.msra.mxu0 0
    %252 = vmatpush.bf16.xpose.msra.mxu0 0
    %253 = vmatpush.bf16.xpose.msra.mxu0 0
    %254 = vmatpush.bf16.xpose.msra.mxu0 0
    %255 = vmatpush.bf16.xpose.msra.mxu0 0
    %256 = vmatpush.bf16.xpose.msra.mxu0 %v247
    %257 = vmatmul.bf16.gmra.mxu0 %v244
    %v258 = vpop.f32.mrf.mxu0
    %v259 = vadd.f32 %v142, %v258
    %v260 = vpop.f32.mrf.mxu0
    %261 = vdwg.mxu0
    %v262 = vunpack.c.l.b16 %v135
    %v263 = vpack.c.b16 %v262, %v262
    %264 = vrot.lane.b32.xlu0 %v263, 96
    %v265 = vpop.permute.xlu0 %264
    %v267 = vsel %vm150, %v135, 0
    %v270 = vsel %vm150, %v265, 0
    %272 = vmatpush.bf16.xpose.msra.mxu0 0
    %273 = vmatpush.bf16.xpose.msra.mxu0 0
    %274 = vmatpush.bf16.xpose.msra.mxu0 0
    %275 = vmatpush.bf16.xpose.msra.mxu0 0
    %276 = vmatpush.bf16.xpose.msra.mxu0 0
    %277 = vmatpush.bf16.xpose.msra.mxu0 0
    %278 = vmatpush.bf16.xpose.msra.mxu0 0
    %279 = vmatpush.bf16.xpose.msra.mxu0 %v270
    %280 = vmatmul.bf16.gmra.mxu0 %v267
    %v281 = vpop.f32.mrf.mxu0
    %v282 = vadd.f32 %v143, %v281
    %v283 = vpop.f32.mrf.mxu0
    %284 = vdwg.mxu0
    %v285 = vunpack.c.l.b16 %v137
    %v286 = vpack.c.b16 %v285, %v285
    %287 = vrot.lane.b32.xlu0 %v286, 96
    %v288 = vpop.permute.xlu0 %287
    %v290 = vsel %vm150, %v137, 0
    %v293 = vsel %vm150, %v288, 0
    %295 = vmatpush.bf16.xpose.msra.mxu0 0
    %296 = vmatpush.bf16.xpose.msra.mxu0 0
    %297 = vmatpush.bf16.xpose.msra.mxu0 0
    %298 = vmatpush.bf16.xpose.msra.mxu0 0
    %299 = vmatpush.bf16.xpose.msra.mxu0 0
    %300 = vmatpush.bf16.xpose.msra.mxu0 0
    %301 = vmatpush.bf16.xpose.msra.mxu0 0
    %302 = vmatpush.bf16.xpose.msra.mxu0 %v293
    %303 = vmatmul.bf16.gmra.mxu0 %v290
    %v304 = vpop.f32.mrf.mxu0
    %v305 = vadd.f32 %v142, %v304
    %v306 = vpop.f32.mrf.mxu0
    %307 = vdwg.mxu0
    %v308 = vunpack.c.l.b16 %v139
    %v309 = vpack.c.b16 %v308, %v308
    %310 = vrot.lane.b32.xlu0 %v309, 96
    %v311 = vpop.permute.xlu0 %310
    %v313 = vsel %vm150, %v139, 0
    %v316 = vsel %vm150, %v311, 0
    %318 = vmatpush.bf16.xpose.msra.mxu0 0
    %319 = vmatpush.bf16.xpose.msra.mxu0 0
    %320 = vmatpush.bf16.xpose.msra.mxu0 0
    %321 = vmatpush.bf16.xpose.msra.mxu0 0
    %322 = vmatpush.bf16.xpose.msra.mxu0 0
    %323 = vmatpush.bf16.xpose.msra.mxu0 0
    %324 = vmatpush.bf16.xpose.msra.mxu0 0
    %325 = vmatpush.bf16.xpose.msra.mxu0 %v316
    %326 = vmatmul.bf16.gmra.mxu0 %v313
    %v327 = vpop.f32.mrf.mxu0
    %v328 = vadd.f32 %v143, %v327
    %v329 = vpop.f32.mrf.mxu0
    %330 = vdwg.mxu0
    %v331 = vsel %vm150, %v167, -inf
    %332 = vmax.xlane.f32.xlu0 %v331
    %v333 = vpop.xlane.xlu0 %332
    %v334 = vsel %vm150, %v190, -inf
    %335 = vmax.xlane.f32.xlu0 %v334
    %v336 = vpop.xlane.xlu0 %335
    %v337 = vsel %vm150, %v213, -inf
    %338 = vmax.xlane.f32.xlu0 %v337
    %v339 = vpop.xlane.xlu0 %338
    %v340 = vsel %vm150, %v236, -inf
    %341 = vmax.xlane.f32.xlu0 %v340
    %v342 = vpop.xlane.xlu0 %341
    %v343 = vsel %vm150, %v259, -inf
    %344 = vmax.xlane.f32.xlu0 %v343
    %v345 = vpop.xlane.xlu0 %344
    %v346 = vsel %vm150, %v282, -inf
    %347 = vmax.xlane.f32.xlu0 %v346
    %v348 = vpop.xlane.xlu0 %347
    %v349 = vsel %vm150, %v305, -inf
    %350 = vmax.xlane.f32.xlu0 %v349
    %v351 = vpop.xlane.xlu0 %350
    %v352 = vsel %vm150, %v328, -inf
    %353 = vmax.xlane.f32.xlu0 %v352
    %v354 = vpop.xlane.xlu0 %353
    %v355 = vsub.f32 %v167, %v333
    %v356 = vsub.f32 %v190, %v336
    %v357 = vsub.f32 %v213, %v339
    %v358 = vsub.f32 %v236, %v342
    %v359 = vsub.f32 %v259, %v345
    %v360 = vsub.f32 %v282, %v348
    %v361 = vsub.f32 %v305, %v351
    %v362 = vsub.f32 %v328, %v354
    %v363 = vmul.f32 %v355, 1.442695
    %v364 = vpow.pop %v363
    %v365 = vmul.f32 %v356, 1.442695
    %v366 = vpow.pop %v365
    %v367 = vmul.f32 %v357, 1.442695
    %v368 = vpow.pop %v367
    %v369 = vmul.f32 %v358, 1.442695
    %v370 = vpow.pop %v369
    %v371 = vmul.f32 %v359, 1.442695
    %v372 = vpow.pop %v371
    %v373 = vmul.f32 %v360, 1.442695
    %v374 = vpow.pop %v373
    %v375 = vmul.f32 %v361, 1.442695
    %v376 = vpow.pop %v375
    %v377 = vmul.f32 %v362, 1.442695
    %v378 = vpow.pop %v377
    %v379 = vsel %vm150, %v364, 0.0
    %380 = vadd.xlane.f32.xlu0 %v379
    %v381 = vpop.xlane.xlu0 %380
    %v382 = vsel %vm150, %v366, 0.0
    %383 = vadd.xlane.f32.xlu0 %v382
    %v384 = vpop.xlane.xlu0 %383
    %v385 = vsel %vm150, %v368, 0.0
    %386 = vadd.xlane.f32.xlu0 %v385
    %v387 = vpop.xlane.xlu0 %386
    %v388 = vsel %vm150, %v370, 0.0
    %389 = vadd.xlane.f32.xlu0 %v388
    %v390 = vpop.xlane.xlu0 %389
    %v391 = vsel %vm150, %v372, 0.0
    %392 = vadd.xlane.f32.xlu0 %v391
    %v393 = vpop.xlane.xlu0 %392
    %v394 = vsel %vm150, %v374, 0.0
    %395 = vadd.xlane.f32.xlu0 %v394
    %v396 = vpop.xlane.xlu0 %395
    %v397 = vsel %vm150, %v376, 0.0
    %398 = vadd.xlane.f32.xlu0 %v397
    %v399 = vpop.xlane.xlu0 %398
    %v400 = vsel %vm150, %v378, 0.0
    %401 = vadd.xlane.f32.xlu0 %v400
    %v402 = vpop.xlane.xlu0 %401
    %v403 = vrcp.pop %v381
    %v404 = vrcp.pop %v384
    %v405 = vrcp.pop %v387
    %v406 = vrcp.pop %v390
    %v407 = vrcp.pop %v393
    %v408 = vrcp.pop %v396
    %v409 = vrcp.pop %v399
    %v410 = vrcp.pop %v402
    %v411 = vmul.f32 %v364, %v403
    %v412 = vmul.f32 %v366, %v404
    %v413 = vmul.f32 %v368, %v405
    %v414 = vmul.f32 %v370, %v406
    %v415 = vmul.f32 %v372, %v407
    %v416 = vmul.f32 %v374, %v408
    %v417 = vmul.f32 %v376, %v409
    %v418 = vmul.f32 %v378, %v410
    %v419 = vpack.c.bf16 %v411, %v411
    %v420 = vpack.c.bf16 %v412, %v412
    %v421 = vpack.c.bf16 %v413, %v413
    %v422 = vpack.c.bf16 %v414, %v414
    %v423 = vpack.c.bf16 %v415, %v415
    %v424 = vpack.c.bf16 %v416, %v416
    %v425 = vpack.c.bf16 %v417, %v417
    %v426 = vpack.c.bf16 %v418, %v418
    %427 = vrot.lane.b32.xlu0 %v147, 64
    %v428 = vpop.permute.xlu0 %427
    %v430 = vsel %vm150, %v419, 0
    %vm432 = vcmask 1043456
    %v434 = vsel %vm432, %v428, 0
    %436 = vmatpush.bf16.msra.mxu0 0
    %437 = vmatpush.bf16.msra.mxu0 0
    %438 = vmatpush.bf16.msra.mxu0 0
    %439 = vmatpush.bf16.msra.mxu0 0
    %440 = vmatpush.bf16.msra.mxu0 0
    %441 = vmatpush.bf16.msra.mxu0 0
    %442 = vmatpush.bf16.msra.mxu0 0
    %443 = vmatpush.bf16.msra.mxu0 %v434
    %444 = vmatmul.bf16.gmra.mxu0 %v430
    %v445 = vpop.f32.mrf.mxu0
    %v446 = vadd.f32 0.0, %v445
    %v447 = vpop.f32.mrf.mxu0
    %448 = vdwg.mxu0
    %449 = vrot.lane.b32.xlu0 %v171, 64
    %v450 = vpop.permute.xlu0 %449
    %v452 = vsel %vm150, %v420, 0
    %v455 = vsel %vm432, %v450, 0
    %457 = vmatpush.bf16.msra.mxu0 0
    %458 = vmatpush.bf16.msra.mxu0 0
    %459 = vmatpush.bf16.msra.mxu0 0
    %460 = vmatpush.bf16.msra.mxu0 0
    %461 = vmatpush.bf16.msra.mxu0 0
    %462 = vmatpush.bf16.msra.mxu0 0
    %463 = vmatpush.bf16.msra.mxu0 0
    %464 = vmatpush.bf16.msra.mxu0 %v455
    %465 = vmatmul.bf16.gmra.mxu0 %v452
    %v466 = vpop.f32.mrf.mxu0
    %v467 = vadd.f32 0.0, %v466
    %v468 = vpop.f32.mrf.mxu0
    %469 = vdwg.mxu0
    %470 = vrot.lane.b32.xlu0 %v194, 64
    %v471 = vpop.permute.xlu0 %470
    %v473 = vsel %vm150, %v421, 0
    %v476 = vsel %vm432, %v471, 0
    %478 = vmatpush.bf16.msra.mxu0 0
    %479 = vmatpush.bf16.msra.mxu0 0
    %480 = vmatpush.bf16.msra.mxu0 0
    %481 = vmatpush.bf16.msra.mxu0 0
    %482 = vmatpush.bf16.msra.mxu0 0
    %483 = vmatpush.bf16.msra.mxu0 0
    %484 = vmatpush.bf16.msra.mxu0 0
    %485 = vmatpush.bf16.msra.mxu0 %v476
    %486 = vmatmul.bf16.gmra.mxu0 %v473
    %v487 = vpop.f32.mrf.mxu0
    %v488 = vadd.f32 0.0, %v487
    %v489 = vpop.f32.mrf.mxu0
    %490 = vdwg.mxu0
    %491 = vrot.lane.b32.xlu0 %v217, 64
    %v492 = vpop.permute.xlu0 %491
    %v494 = vsel %vm150, %v422, 0
    %v497 = vsel %vm432, %v492, 0
    %499 = vmatpush.bf16.msra.mxu0 0
    %500 = vmatpush.bf16.msra.mxu0 0
    %501 = vmatpush.bf16.msra.mxu0 0
    %502 = vmatpush.bf16.msra.mxu0 0
    %503 = vmatpush.bf16.msra.mxu0 0
    %504 = vmatpush.bf16.msra.mxu0 0
    %505 = vmatpush.bf16.msra.mxu0 0
    %506 = vmatpush.bf16.msra.mxu0 %v497
    %507 = vmatmul.bf16.gmra.mxu0 %v494
    %v508 = vpop.f32.mrf.mxu0
    %v509 = vadd.f32 0.0, %v508
    %v510 = vpop.f32.mrf.mxu0
    %511 = vdwg.mxu0
    %512 = vrot.lane.b32.xlu0 %v240, 64
    %v513 = vpop.permute.xlu0 %512
    %v515 = vsel %vm150, %v423, 0
    %v518 = vsel %vm432, %v513, 0
    %520 = vmatpush.bf16.msra.mxu0 0
    %521 = vmatpush.bf16.msra.mxu0 0
    %522 = vmatpush.bf16.msra.mxu0 0
    %523 = vmatpush.bf16.msra.mxu0 0
    %524 = vmatpush.bf16.msra.mxu0 0
    %525 = vmatpush.bf16.msra.mxu0 0
    %526 = vmatpush.bf16.msra.mxu0 0
    %527 = vmatpush.bf16.msra.mxu0 %v518
    %528 = vmatmul.bf16.gmra.mxu0 %v515
    %v529 = vpop.f32.mrf.mxu0
    %v530 = vadd.f32 0.0, %v529
    %v531 = vpop.f32.mrf.mxu0
    %532 = vdwg.mxu0
    %533 = vrot.lane.b32.xlu0 %v263, 64
    %v534 = vpop.permute.xlu0 %533
    %v536 = vsel %vm150, %v424, 0
    %v539 = vsel %vm432, %v534, 0
    %541 = vmatpush.bf16.msra.mxu0 0
    %542 = vmatpush.bf16.msra.mxu0 0
    %543 = vmatpush.bf16.msra.mxu0 0
    %544 = vmatpush.bf16.msra.mxu0 0
    %545 = vmatpush.bf16.msra.mxu0 0
    %546 = vmatpush.bf16.msra.mxu0 0
    %547 = vmatpush.bf16.msra.mxu0 0
    %548 = vmatpush.bf16.msra.mxu0 %v539
    %549 = vmatmul.bf16.gmra.mxu0 %v536
    %v550 = vpop.f32.mrf.mxu0
    %v551 = vadd.f32 0.0, %v550
    %v552 = vpop.f32.mrf.mxu0
    %553 = vdwg.mxu0
    %554 = vrot.lane.b32.xlu0 %v286, 64
    %v555 = vpop.permute.xlu0 %554
    %v557 = vsel %vm150, %v425, 0
    %v560 = vsel %vm432, %v555, 0
    %562 = vmatpush.bf16.msra.mxu0 0
    %563 = vmatpush.bf16.msra.mxu0 0
    %564 = vmatpush.bf16.msra.mxu0 0
    %565 = vmatpush.bf16.msra.mxu0 0
    %566 = vmatpush.bf16.msra.mxu0 0
    %567 = vmatpush.bf16.msra.mxu0 0
    %568 = vmatpush.bf16.msra.mxu0 0
    %569 = vmatpush.bf16.msra.mxu0 %v560
    %570 = vmatmul.bf16.gmra.mxu0 %v557
    %v571 = vpop.f32.mrf.mxu0
    %v572 = vadd.f32 0.0, %v571
    %v573 = vpop.f32.mrf.mxu0
    %574 = vdwg.mxu0
    %575 = vrot.lane.b32.xlu0 %v309, 64
    %v576 = vpop.permute.xlu0 %575
    %v578 = vsel %vm150, %v426, 0
    %v581 = vsel %vm432, %v576, 0
    %583 = vmatpush.bf16.msra.mxu0 0
    %584 = vmatpush.bf16.msra.mxu0 0
    %585 = vmatpush.bf16.msra.mxu0 0
    %586 = vmatpush.bf16.msra.mxu0 0
    %587 = vmatpush.bf16.msra.mxu0 0
    %588 = vmatpush.bf16.msra.mxu0 0
    %589 = vmatpush.bf16.msra.mxu0 0
    %590 = vmatpush.bf16.msra.mxu0 %v581
    %591 = vmatmul.bf16.gmra.mxu0 %v578
    %v592 = vpop.f32.mrf.mxu0
    %v593 = vadd.f32 0.0, %v592
    %v594 = vpop.f32.mrf.mxu0
    %595 = vdwg.mxu0
    %598 = vrot.lane.b32.xlu0 %v488, 8
    %v599 = vpop.permute.xlu0 %598
    %600 = vrot.lane.b32.xlu0 %v509, 8
    %v601 = vpop.permute.xlu0 %600
    %606 = vrot.lane.b32.xlu0 %v530, 16
    %v607 = vpop.permute.xlu0 %606
    %608 = vrot.lane.b32.xlu0 %v551, 16
    %v609 = vpop.permute.xlu0 %608
    %614 = vrot.lane.b32.xlu0 %v572, 24
    %v615 = vpop.permute.xlu0 %614
    %616 = vrot.lane.b32.xlu0 %v593, 24
    %v617 = vpop.permute.xlu0 %616
    %v620 = vsel %vm150, %v446, %v599
    %v621 = vsel %vm150, %v467, %v601
    %vm622 = vcmask 130048
    %v623 = vsel %vm622, %v620, %v607
    %v624 = vsel %vm622, %v621, %v609
    %vm625 = vcmask 195584
    %v626 = vsel %vm625, %v623, %v615
    %v627 = vsel %vm625, %v624, %v617
    %v628 = vpack.c.bf16 %v627, %v626
    %v629 = vld [vmem:[%s3] sm:$0xf]
    %v630 = vld [vmem:[%s3 + $0x4] sm:$0xf]
    %v631 = vld [vmem:[%s3 + $0x8] sm:$0xf]
    %v632 = vld [vmem:[%s3 + $0xc] sm:$0xf]
    %v633 = vperm.slane %v77, 1
    %v638 = vunpack.c.l.b16 %v629
    %v639 = vunpack.c.l.b16 %v630
    %v640 = vunpack.c.l.b16 %v631
    %v641 = vunpack.c.l.b16 %v632
    %v642 = vpack.c.b16 %v639, %v638
    %v643 = vpack.c.b16 %v641, %v640
    %v647 = vsel %vm100, %v628, 0
    %649 = vmatpush.bf16.msra.mxu0 0
    %650 = vmatpush.bf16.msra.mxu0 0
    %651 = vmatpush.bf16.msra.mxu0 0
    %652 = vmatpush.bf16.msra.mxu0 0
    %653 = vmatpush.bf16.msra.mxu0 0
    %654 = vmatpush.bf16.msra.mxu0 0
    %655 = vmatpush.bf16.msra.mxu0 %v643
    %656 = vmatpush.bf16.msra.mxu0 %v642
    %657 = vmatmul.bf16.gmra.mxu0 %v647
    %v658 = vpop.f32.mrf.mxu0
    %v659 = vadd.f32 %v633, %v658
    %v660 = vpop.f32.mrf.mxu0
    %v661 = vadd.f32 %v633, %v660
    %662 = vdwg.mxu0
    %v663 = vadd.f32 %v75, %v659
    %v664 = vadd.f32 %v76, %v661
    %v665 = vsel %vm100, %v663, 0.0
    %666 = vadd.xlane.f32.xlu0 %v665
    %v667 = vpop.xlane.xlu0 %666
    %v668 = vsel %vm100, %v664, 0.0
    %669 = vadd.xlane.f32.xlu0 %v668
    %v670 = vpop.xlane.xlu0 %669
    %v671 = vrcp.pop 32.0
    %v672 = vmul.f32 32.0, %v671
    %v673 = vsub.f32 1.0, %v672
    %v674 = vmul.f32 %v671, %v673
    %v675 = vadd.f32 %v671, %v674
    %vm676 = vweird.f32 %v671
    %v677 = vsel %vm676, %v671, %v675
    %v678 = vmul.f32 %v667, %v677
    %v679 = vmul.f32 %v670, %v677
    %v680 = vsub.f32 %v663, %v678
    %v681 = vsub.f32 %v664, %v679
    %v682 = vmul.f32 %v680, %v680
    %v683 = vmul.f32 %v681, %v681
    %v684 = vsel %vm100, %v682, 0.0
    %685 = vadd.xlane.f32.xlu0 %v684
    %v686 = vpop.xlane.xlu0 %685
    %v687 = vsel %vm100, %v683, 0.0
    %688 = vadd.xlane.f32.xlu0 %v687
    %v689 = vpop.xlane.xlu0 %688
    %v690 = vmul.f32 %v686, %v677
    %v691 = vmul.f32 %v689, %v677
    %v692 = vadd.f32 %v690, 1e-05
    %v693 = vadd.f32 %v691, 1e-05
    %v694 = vrsqrt.pop %v692
    %v695 = vmul.f32 %v694, %v692
    %v696 = vmul.f32 %v695, %v694
    %v697 = vmul.f32 0.5, %v696
    %v698 = vsub.f32 1.5, %v697
    %v699 = vmul.f32 %v694, %v698
    %vm700 = vweird.f32 %v692
    %vm701 = vweird.f32 %v694
    %vm702 = vmor %vm700, %vm701
    %v703 = vsel %vm702, %v694, %v699
    %v704 = vrsqrt.pop %v693
    %v705 = vmul.f32 %v704, %v693
    %v706 = vmul.f32 %v705, %v704
    %v707 = vmul.f32 0.5, %v706
    %v708 = vsub.f32 1.5, %v707
    %v709 = vmul.f32 %v704, %v708
    %vm710 = vweird.f32 %v693
    %vm711 = vweird.f32 %v704
    %vm712 = vmor %vm710, %vm711
    %v713 = vsel %vm712, %v704, %v709
    %v714 = vmul.f32 %v680, %v703
    %v715 = vmul.f32 %v681, %v713
    %v716 = vperm.slane %v77, 2
    %v717 = vmul.f32 %v714, %v716
    %v718 = vmul.f32 %v715, %v716
    %v719 = vperm.slane %v77, 3
    %v720 = vadd.f32 %v717, %v719
    %v721 = vadd.f32 %v718, %v719
    %v722 = vpack.c.bf16 %v721, %v720
    %v723 = vld [vmem:[%s4] sm:$0xf]
    %v724 = vld [vmem:[%s4 + $0x4] sm:$0xf]
    %v725 = vld [vmem:[%s4 + $0x8] sm:$0xf]
    %v726 = vld [vmem:[%s4 + $0xc] sm:$0xf]
    %v727 = vperm.slane %v77, 4
    %v732 = vunpack.c.l.b16 %v723
    %v733 = vunpack.c.l.b16 %v724
    %v734 = vunpack.c.l.b16 %v725
    %v735 = vunpack.c.l.b16 %v726
    %v736 = vpack.c.b16 %v733, %v732
    %v737 = vpack.c.b16 %v735, %v734
    %v741 = vsel %vm100, %v722, 0
    %743 = vmatpush.bf16.msra.mxu0 0
    %744 = vmatpush.bf16.msra.mxu0 0
    %745 = vmatpush.bf16.msra.mxu0 0
    %746 = vmatpush.bf16.msra.mxu0 0
    %747 = vmatpush.bf16.msra.mxu0 0
    %748 = vmatpush.bf16.msra.mxu0 0
    %749 = vmatpush.bf16.msra.mxu0 %v737
    %750 = vmatpush.bf16.msra.mxu0 %v736
    %751 = vmatmul.bf16.gmra.mxu0 %v741
    %v752 = vpop.f32.mrf.mxu0
    %v753 = vadd.f32 %v727, %v752
    %v754 = vpop.f32.mrf.mxu0
    %v755 = vadd.f32 %v727, %v754
    %756 = vdwg.mxu0
    %v757 = vmax.f32 %v753, 0.0
    %v758 = vmax.f32 %v755, 0.0
    %v759 = vpack.c.bf16 %v758, %v757
    %v760 = vld [vmem:[%s5] sm:$0xf]
    %v761 = vld [vmem:[%s5 + $0x4] sm:$0xf]
    %v762 = vld [vmem:[%s5 + $0x8] sm:$0xf]
    %v763 = vld [vmem:[%s5 + $0xc] sm:$0xf]
    %v764 = vld [vmem:[%s5 + $0x10] sm:$0xf]
    %v765 = vld [vmem:[%s5 + $0x14] sm:$0xf]
    %v766 = vld [vmem:[%s5 + $0x18] sm:$0xf]
    %v767 = vld [vmem:[%s5 + $0x1c] sm:$0xf]
    %v768 = vperm.slane %v77, 5
    %v777 = vunpack.c.l.b16 %v760
    %v778 = vunpack.c.l.b16 %v761
    %v779 = vunpack.c.l.b16 %v762
    %v780 = vunpack.c.l.b16 %v763
    %v781 = vunpack.c.l.b16 %v764
    %v782 = vunpack.c.l.b16 %v765
    %v783 = vunpack.c.l.b16 %v766
    %v784 = vunpack.c.l.b16 %v767
    %v785 = vpack.c.b16 %v778, %v777
    %v786 = vpack.c.b16 %v780, %v779
    %v787 = vpack.c.b16 %v782, %v781
    %v788 = vpack.c.b16 %v784, %v783
    %vm793 = vcmask 523264
    %v795 = vsel %vm793, %v759, 0
    %797 = vmatpush.bf16.msra.mxu0 0
    %798 = vmatpush.bf16.msra.mxu0 0
    %799 = vmatpush.bf16.msra.mxu0 0
    %800 = vmatpush.bf16.msra.mxu0 0
    %801 = vmatpush.bf16.msra.mxu0 %v788
    %802 = vmatpush.bf16.msra.mxu0 %v787
    %803 = vmatpush.bf16.msra.mxu0 %v786
    %804 = vmatpush.bf16.msra.mxu0 %v785
    %805 = vmatmul.bf16.gmra.mxu0 %v795
    %v806 = vpop.f32.mrf.mxu0
    %v807 = vadd.f32 %v768, %v806
    %v808 = vpop.f32.mrf.mxu0
    %v809 = vadd.f32 %v768, %v808
    %810 = vdwg.mxu0
    %v811 = vadd.f32 %v720, %v807
    %v812 = vadd.f32 %v721, %v809
    %v813 = vsel %vm100, %v811, 0.0
    %814 = vadd.xlane.f32.xlu0 %v813
    %v815 = vpop.xlane.xlu0 %814
    %v816 = vsel %vm100, %v812, 0.0
    %817 = vadd.xlane.f32.xlu0 %v816
    %v818 = vpop.xlane.xlu0 %817
    %v819 = vmul.f32 %v815, %v677
    %v820 = vmul.f32 %v818, %v677
    %v821 = vsub.f32 %v811, %v819
    %v822 = vsub.f32 %v812, %v820
    %v823 = vmul.f32 %v821, %v821
    %v824 = vmul.f32 %v822, %v822
    %v825 = vsel %vm100, %v823, 0.0
    %826 = vadd.xlane.f32.xlu0 %v825
    %v827 = vpop.xlane.xlu0 %826
    %v828 = vsel %vm100, %v824, 0.0
    %829 = vadd.xlane.f32.xlu0 %v828
    %v830 = vpop.xlane.xlu0 %829
    %v831 = vmul.f32 %v827, %v677
    %v832 = vmul.f32 %v830, %v677
    %v833 = vadd.f32 %v831, 1e-05
    %v834 = vadd.f32 %v832, 1e-05
    %v835 = vrsqrt.pop %v833
    %v836 = vmul.f32 %v835, %v833
    %v837 = vmul.f32 %v836, %v835
    %v838 = vmul.f32 0.5, %v837
    %v839 = vsub.f32 1.5, %v838
    %v840 = vmul.f32 %v835, %v839
    %vm841 = vweird.f32 %v833
    %vm842 = vweird.f32 %v835
    %vm843 = vmor %vm841, %vm842
    %v844 = vsel %vm843, %v835, %v840
    %v845 = vrsqrt.pop %v834
    %v846 = vmul.f32 %v845, %v834
    %v847 = vmul.f32 %v846, %v845
    %v848 = vmul.f32 0.5, %v847
    %v849 = vsub.f32 1.5, %v848
    %v850 = vmul.f32 %v845, %v849
    %vm851 = vweird.f32 %v834
    %vm852 = vweird.f32 %v845
    %vm853 = vmor %vm851, %vm852
    %v854 = vsel %vm853, %v845, %v850
    %v855 = vmul.f32 %v821, %v844
    %v856 = vmul.f32 %v822, %v854
    %v857 = vmul.f32 %v855, %v716
    %v858 = vmul.f32 %v856, %v716
    %v859 = vadd.f32 %v857, %v719
    %v860 = vadd.f32 %v858, %v719
    %v861 = vpack.c.bf16 %v859, %v859
    %v862 = vpack.c.bf16 %v860, %v860
    %vm863 = vcmask 257024
    %864 = vst.msk [vmem:[#allocation8] sm:$0xf] %vm863, %v861
    %865 = vst.msk [vmem:[#allocation8 + $0x4] sm:$0xf] %vm863, %v862
    // Predicated region
    $region42: #{tpu_custom_call.1} parent=1 // pred_check
      _
    $region43: #{tpu_custom_call.1} parent=1 // pred_check_branch
      %867 = sbr.rel (0) target = $region45
    $region44: #{tpu_custom_call.1} parent=1 // pred_region
      %869 = vsyncadd [#allocation4], 0
      %s870 = sshll.u32 [#allocation8], 4
      %s871 = int_to_ptr.vmem [resolvable:$true] %s870
      %s872 = sshll.u32 %s7, 4
      %s873 = int_to_ptr.hbm [resolvable:$true] %s872
      %878 = dma.vmem_to_hbm [thread:$0]  %s871, 128, %s873, [#allocation4], 64, 64, 4
    $region45: #{tpu_custom_call.1} parent=1 // pred_fallthru
      _
    // Predicated region
    $region46: #{tpu_custom_call.1} parent=1 // pred_check
      _
    $region47: #{tpu_custom_call.1} parent=1 // pred_check_branch
      %880 = sbr.rel (0) target = $region49
    $region48: #{tpu_custom_call.1} parent=1 // pred_region
      %882 = dma.done [#allocation4], 128
    $region49: #{tpu_custom_call.1} parent=1 // pred_fallthru
      _
    %883 = vsyncpa [#allocation3], 1
    %884 = vsyncpa [#allocation6], 1
    %885 = vsyncpa [#allocation4], 1

</llo_original>
